<compile_context>
chip_gen: v6e
topology: v6e:2x2x1
jax: 0.10.0
libtpu: 0.0.40
codegen_flags: <defaults>
</compile_context>

<pallas_src>
import jax
import jax.numpy as jnp
from jax.experimental import pallas as pl
from jax.experimental.pallas import tpu as pltpu


def _round_up(n: int, m: int) -> int:
    return ((n + m - 1) // m) * m


def _cdiv(a: int, b: int) -> int:
    return -(-a // b)


# Default batch-tile cap: big enough that DMA/compute dwarf the ~0.35us per-step cost,
# small enough that (x tile + out tile + activations) is a tiny slice of scoped VMEM
# even on v5e (16 MiB) / v7x (32 of 64 MiB).
_DEFAULT_BATCH_TILE = 2048


def dqn_mlp_kernel(x_ref, w1_ref, b1_ref, w2_ref, b2_ref, w3_ref, b3_ref, o_ref):
    """One (TB, input) batch tile; all three layers fused in VMEM.

    Matmuls run in the weights' dtype (f32 or bf16) with f32 accumulation; bias add
    and ReLU stay f32; the (TB, output) result is stored at its natural narrow width.
    """
    w_dtype = w1_ref.dtype
    x = x_ref[...].astype(w_dtype)

    h = jnp.dot(x, w1_ref[...], preferred_element_type=jnp.float32) + b1_ref[...]
    h = jnp.maximum(h, 0.0)

    h = jnp.dot(h.astype(w_dtype), w2_ref[...], preferred_element_type=jnp.float32)
    h = jnp.maximum(h + b2_ref[...], 0.0)

    out = jnp.dot(h.astype(w_dtype), w3_ref[...], preferred_element_type=jnp.float32)
    o_ref[...] = (out + b3_ref[...]).astype(o_ref.dtype)


def _choose_batch_tiling(B: int, tb_max: int):
    """Pick (tile, padded_batch) with at most ~one partial tile of padding.

    Tiles are multiples of 16 rows so both f32 (8-sublane) and bf16 (16-sublane)
    activation tiles are legal.
    """
    b16 = _round_up(B, 16)
    n_blocks = _cdiv(b16, tb_max)
    # v7x megacore: a single giant tile keeps one TensorCore idle.  If the batch is
    # large enough that two tiles still amortize per-step overhead, use >= 2 blocks.
    if n_blocks == 1 and b16 >= 1024:
        n_blocks = 2
    tb = _round_up(_cdiv(b16, n_blocks), 16)
    bp = tb * n_blocks
    return tb, bp


def dqn_forward(x, prepped_params, output_size, *, batch_tile=None):
    """x: (B, input_size) float; prepped_params from prep_params() ((in, out) layout)."""
    w1, b1, w2, b2, w3, b3 = prepped_params
    B, input_size = x.shape
    hidden_size = w1.shape[1]
    assert w3.shape[1] == output_size

    tb_max = batch_tile if batch_tile is not None else _DEFAULT_BATCH_TILE
    tb, bp = _choose_batch_tiling(B, tb_max)
    n_blocks = bp // tb

    xk = x.astype(w1.dtype)
    if bp != B:
        # Only the (cheap) batch dim is padded; features stay at their natural width.
        xk = jnp.pad(xk, ((0, bp - B), (0, 0)))

    # Weights/biases: full-array blocks with a constant index map -> loaded once,
    # VMEM-resident across all grid steps (no per-step re-DMA).
    resident = lambda shape: pl.BlockSpec(shape, lambda i: (0,) * len(shape))

    flops_per_row = 2 * (
        input_size * hidden_size + hidden_size * hidden_size + hidden_size * output_size
    )
    param_bytes = sum(int(a.size) * a.dtype.itemsize for a in prepped_params)
    cost = pl.CostEstimate(
        flops=bp * flops_per_row,
        transcendentals=0,
        bytes_accessed=int(xk.size) * xk.dtype.itemsize + bp * output_size * 4 + param_bytes,
    )

    out = pl.pallas_call(
        dqn_mlp_kernel,
        out_shape=jax.ShapeDtypeStruct((bp, output_size), jnp.float32),
        grid=(n_blocks,),
        in_specs=[
            pl.BlockSpec((tb, input_size), lambda i: (i, 0)),  # streamed batch tile
            resident(w1.shape),
            resident(b1.shape),
            resident(w2.shape),
            resident(b2.shape),
            resident(w3.shape),
            resident(b3.shape),
        ],
        out_specs=pl.BlockSpec((tb, output_size), lambda i: (i, 0)),
        compiler_params=pltpu.CompilerParams(
            # batch tiles are independent -> megacore sharding on v7x
            dimension_semantics=("parallel",)
        ),
        cost_estimate=cost,
    )(xk, w1, b1, w2, b2, w3, b3)

    return out if bp == B else out[:B]


def init_params(key, input_size, hidden_size, output_size):
    """Unpadded f32 params, (in, out) layout (transposed vs. PyTorch's Linear weight)."""

    def linear(key, fan_in, fan_out):
        kw, kb = jax.random.split(key)
        bound = 1.0 / jnp.sqrt(fan_in)
        w = jax.random.uniform(kw, (fan_in, fan_out), jnp.float32, -bound, bound)
        b = jax.random.uniform(kb, (1, fan_out), jnp.float32, -bound, bound)
        return w, b

    k1, k2, k3 = jax.random.split(key, 3)
    w1, b1 = linear(k1, input_size, hidden_size)
    w2, b2 = linear(k2, hidden_size, hidden_size)
    w3, b3 = linear(k3, hidden_size, output_size)
    return (w1, b1, w2, b2, w3, b3)


def prep_params(params, matmul_dtype=jnp.float32):
    """One-time param prep: no padding, just optional bf16 weights for the MXU.

    Biases stay f32 (they are added to the f32 accumulator).  matmul_dtype=bf16 is the
    v6e/v7x fast path; f32 is exact vs. the reference.
    """
    w1, b1, w2, b2, w3, b3 = params
    return (
        w1.astype(matmul_dtype), b1.astype(jnp.float32),
        w2.astype(matmul_dtype), b2.astype(jnp.float32),
        w3.astype(matmul_dtype), b3.astype(jnp.float32),
    )


if __name__ == "__main__":
    input_size, hidden_size, output_size = 16, 64, 4
    batch = 8

    key = jax.random.PRNGKey(0)
    kx, kp = jax.random.split(key)

    x = jax.random.normal(kx, (batch, input_size), jnp.float32)
    params = init_params(kp, input_size, hidden_size, output_size)

    w1, b1, w2, b2, w3, b3 = params

    def ref_fwd(xin):
        h = jnp.maximum(xin @ w1 + b1, 0.0)
        h = jnp.maximum(h @ w2 + b2, 0.0)
        return h @ w3 + b3

    # f32 path, single tile.
    prepped = prep_params(params)
    out = dqn_forward(x, prepped, output_size)
    jax.block_until_ready(out)
    assert out.shape == (batch, output_size)
    assert jnp.allclose(out, ref_fwd(x), atol=1e-5, rtol=1e-5)

    # Multi-tile path with a ragged batch (exercises grid > 1 + partial-tile padding).
    big_batch = 300
    xb = jax.random.normal(jax.random.PRNGKey(1), (big_batch, input_size), jnp.float32)
    out_b = dqn_forward(xb, prepped, output_size, batch_tile=128)
    jax.block_until_ready(out_b)
    assert out_b.shape == (big_batch, output_size)
    assert jnp.allclose(out_b, ref_fwd(xb), atol=1e-5, rtol=1e-5)

    # bf16-MXU path (v6e/v7x perf mode): f32 accumulate, so only a loose tolerance
    # vs. the f32 reference is needed.
    prepped_bf16 = prep_params(params, matmul_dtype=jnp.bfloat16)
    out_bf = dqn_forward(xb, prepped_bf16, output_size)
    jax.block_until_ready(out_bf)
    assert out_bf.shape == (big_batch, output_size)
    assert jnp.allclose(out_bf, ref_fwd(xb), atol=5e-2, rtol=5e-2)

    print("KERNEL_OK")
</pallas_src>

<mosaic_0001>
module attributes {stable_mosaic.version = 11 : i64} {
  func.func @dqn_mlp_kernel(%arg0: i32, %arg1: memref<16x16xf32, #tpu.memory_space<vmem>>, %arg2: memref<16x64xf32, #tpu.memory_space<vmem>>, %arg3: memref<1x64xf32, #tpu.memory_space<vmem>>, %arg4: memref<64x64xf32, #tpu.memory_space<vmem>>, %arg5: memref<1x64xf32, #tpu.memory_space<vmem>>, %arg6: memref<64x4xf32, #tpu.memory_space<vmem>>, %arg7: memref<1x4xf32, #tpu.memory_space<vmem>>, %arg8: memref<16x4xf32, #tpu.memory_space<vmem>>) attributes {dimension_semantics = [#tpu.dimension_semantics<parallel>], iteration_bounds = array<i64: 1>, scalar_prefetch = 0 : i64, scratch_operands = 0 : i64, tpu.core_type = #tpu.core_type<tc>, window_params = [{transform_indices = @transform_0, window_bounds = array<i64: 16, 16>}, {pipeline_mode = #tpu.pipeline_mode<synchronous>, transform_indices = @transform_1, window_bounds = array<i64: 16, 64>}, {pipeline_mode = #tpu.pipeline_mode<synchronous>, transform_indices = @transform_2, window_bounds = array<i64: 1, 64>}, {pipeline_mode = #tpu.pipeline_mode<synchronous>, transform_indices = @transform_3, window_bounds = array<i64: 64, 64>}, {pipeline_mode = #tpu.pipeline_mode<synchronous>, transform_indices = @transform_4, window_bounds = array<i64: 1, 64>}, {pipeline_mode = #tpu.pipeline_mode<synchronous>, transform_indices = @transform_5, window_bounds = array<i64: 64, 4>}, {pipeline_mode = #tpu.pipeline_mode<synchronous>, transform_indices = @transform_6, window_bounds = array<i64: 1, 4>}, {transform_indices = @transform_7, window_bounds = array<i64: 16, 4>}]} {
    %c0 = arith.constant 0 : index
    %c0_0 = arith.constant 0 : index
    %0 = vector.load %arg1[%c0, %c0_0] : memref<16x16xf32, #tpu.memory_space<vmem>>, vector<16x16xf32>
    %c0_1 = arith.constant 0 : index
    %c0_2 = arith.constant 0 : index
    %1 = vector.load %arg2[%c0_1, %c0_2] : memref<16x64xf32, #tpu.memory_space<vmem>>, vector<16x64xf32>
    %cst = arith.constant dense<0.000000e+00> : vector<16x64xf32>
    %2 = tpu.matmul %0, %1, %cst {dimension_numbers = #tpu.dot_dimension_numbers<[1], [0], [0], [1], [0, 0, 1, 1], [], []>} : vector<16x16xf32>, vector<16x64xf32>, vector<16x64xf32> -> vector<16x64xf32>
    %c0_3 = arith.constant 0 : index
    %c0_4 = arith.constant 0 : index
    %3 = vector.load %arg3[%c0_3, %c0_4] : memref<1x64xf32, #tpu.memory_space<vmem>>, vector<1x64xf32>
    %4 = vector.broadcast %3 : vector<1x64xf32> to vector<16x64xf32>
    %5 = arith.addf %2, %4 : vector<16x64xf32>
    %cst_5 = arith.constant 0.000000e+00 : f32
    %6 = vector.broadcast %cst_5 : f32 to vector<16x64xf32>
    %7 = arith.maximumf %5, %6 : vector<16x64xf32>
    %c0_6 = arith.constant 0 : index
    %c0_7 = arith.constant 0 : index
    %8 = vector.load %arg4[%c0_6, %c0_7] : memref<64x64xf32, #tpu.memory_space<vmem>>, vector<64x64xf32>
    %cst_8 = arith.constant dense<0.000000e+00> : vector<16x64xf32>
    %9 = tpu.matmul %7, %8, %cst_8 {dimension_numbers = #tpu.dot_dimension_numbers<[1], [0], [0], [1], [0, 0, 1, 1], [], []>} : vector<16x64xf32>, vector<64x64xf32>, vector<16x64xf32> -> vector<16x64xf32>
    %c0_9 = arith.constant 0 : index
    %c0_10 = arith.constant 0 : index
    %10 = vector.load %arg5[%c0_9, %c0_10] : memref<1x64xf32, #tpu.memory_space<vmem>>, vector<1x64xf32>
    %11 = vector.broadcast %10 : vector<1x64xf32> to vector<16x64xf32>
    %12 = arith.addf %9, %11 : vector<16x64xf32>
    %cst_11 = arith.constant 0.000000e+00 : f32
    %13 = vector.broadcast %cst_11 : f32 to vector<16x64xf32>
    %14 = arith.maximumf %12, %13 : vector<16x64xf32>
    %c0_12 = arith.constant 0 : index
    %c0_13 = arith.constant 0 : index
    %15 = vector.load %arg6[%c0_12, %c0_13] : memref<64x4xf32, #tpu.memory_space<vmem>>, vector<64x4xf32>
    %cst_14 = arith.constant dense<0.000000e+00> : vector<16x4xf32>
    %16 = tpu.matmul %14, %15, %cst_14 {dimension_numbers = #tpu.dot_dimension_numbers<[1], [0], [0], [1], [0, 0, 1, 1], [], []>} : vector<16x64xf32>, vector<64x4xf32>, vector<16x4xf32> -> vector<16x4xf32>
    %c0_15 = arith.constant 0 : index
    %c0_16 = arith.constant 0 : index
    %17 = vector.load %arg7[%c0_15, %c0_16] : memref<1x4xf32, #tpu.memory_space<vmem>>, vector<1x4xf32>
    %18 = vector.broadcast %17 : vector<1x4xf32> to vector<16x4xf32>
    %19 = arith.addf %16, %18 : vector<16x4xf32>
    %c0_17 = arith.constant 0 : index
    %c0_18 = arith.constant 0 : index
    %20 = vector.load %arg8[%c0_17, %c0_18] : memref<16x4xf32, #tpu.memory_space<vmem>>, vector<16x4xf32>
    tpu.vector_store %arg8[%c0_17, %c0_18], %19 {strides = array<i32>} : memref<16x4xf32, #tpu.memory_space<vmem>>, vector<16x4xf32>,
    return
  }
  func.func @transform_0(%arg0: i32) -> (i32, i32) {
    %c0_i32 = arith.constant 0 : i32
    %c0_i32_0 = arith.constant 0 : i32
    return %arg0, %c0_i32 : i32, i32
  }
  func.func @transform_1(%arg0: i32) -> (i32, i32) {
    %c0_i32 = arith.constant 0 : i32
    %c0_i32_0 = arith.constant 0 : i32
    %c0_i32_1 = arith.constant 0 : i32
    return %c0_i32, %c0_i32_0 : i32, i32
  }
  func.func @transform_2(%arg0: i32) -> (i32, i32) {
    %c0_i32 = arith.constant 0 : i32
    %c0_i32_0 = arith.constant 0 : i32
    %c0_i32_1 = arith.constant 0 : i32
    return %c0_i32, %c0_i32_0 : i32, i32
  }
  func.func @transform_3(%arg0: i32) -> (i32, i32) {
    %c0_i32 = arith.constant 0 : i32
    %c0_i32_0 = arith.constant 0 : i32
    %c0_i32_1 = arith.constant 0 : i32
    return %c0_i32, %c0_i32_0 : i32, i32
  }
  func.func @transform_4(%arg0: i32) -> (i32, i32) {
    %c0_i32 = arith.constant 0 : i32
    %c0_i32_0 = arith.constant 0 : i32
    %c0_i32_1 = arith.constant 0 : i32
    return %c0_i32, %c0_i32_0 : i32, i32
  }
  func.func @transform_5(%arg0: i32) -> (i32, i32) {
    %c0_i32 = arith.constant 0 : i32
    %c0_i32_0 = arith.constant 0 : i32
    %c0_i32_1 = arith.constant 0 : i32
    return %c0_i32, %c0_i32_0 : i32, i32
  }
  func.func @transform_6(%arg0: i32) -> (i32, i32) {
    %c0_i32 = arith.constant 0 : i32
    %c0_i32_0 = arith.constant 0 : i32
    %c0_i32_1 = arith.constant 0 : i32
    return %c0_i32, %c0_i32_0 : i32, i32
  }
  func.func @transform_7(%arg0: i32) -> (i32, i32) {
    %c0_i32 = arith.constant 0 : i32
    %c0_i32_0 = arith.constant 0 : i32
    return %arg0, %c0_i32 : i32, i32
  }
}

</mosaic_0001>

<llo_original>
// kernel: tpu_custom_call.1
$region0: #{tpu_custom_call.1}
  #allocation0 [shape = 'u32[]', space=smem, size = 0x4, offset = 0x4, fixed_abs, tag = 'smem constant byte address 0x4 - core index']
  #allocation1 [shape = 'u32[144,128]{1,0:T(1,128)}', space=vmem, size = 0x12000, scoped, tag = 'internal scratch']
  %s0 = inlined_call_operand.hbm [shape: f32[16,16], index: 0, kind: input, shape index: {}]
  %s1 = inlined_call_operand.hbm [shape: f32[16,64], index: 1, kind: input, shape index: {}]
  %s2 = inlined_call_operand.vmem [shape: f32[1,64], index: 2, kind: input, shape index: {}]
  %s3 = inlined_call_operand.vmem [shape: f32[64,64], index: 3, kind: input, shape index: {}]
  %s4 = inlined_call_operand.vmem [shape: f32[1,64], index: 4, kind: input, shape index: {}]
  %s5 = inlined_call_operand.vmem [shape: f32[64,4], index: 5, kind: input, shape index: {}]
  %s6 = inlined_call_operand.vmem [shape: f32[1,4], index: 6, kind: input, shape index: {}]
  %s7 = inlined_call_operand.vmem [shape: f32[16,4], index: 7, kind: output, shape index: {}]
  %s8 = sld [smem:[#allocation0]]
  $region46: #{tpu_custom_call.1} parent=0
    _
  %s10 = ssub.s32 1, %s8
  %s11 = scalar_select 0, %s10, %s8
  $region1: #{tpu_custom_call.1} parent=0
    #allocation2 [shape = 'u8[8192]{0}', space=vmem, size = 0x2000, scoped, tag = 'input window, operand 0, single buffered']
    #allocation3 [shape = 's32[1]{0}', space=sflag, size = 0x4, scoped, tag = 'scoped memory for tpu_custom_call.1']
    #allocation4 [shape = 'u8[8192]{0}', space=vmem, size = 0x2000, scoped, tag = 'input window, operand 1, single buffered']
    #allocation5 [shape = 's32[1]{0}', space=sflag, size = 0x4, scoped, tag = 'scoped memory for tpu_custom_call.1']
    %12 = vsyncpa [#allocation3], 0
    %13 = vsyncpa [#allocation5], 0
    // Predicated region
    $region2: #{tpu_custom_call.1} parent=1 // pred_check
      _
    $region3: #{tpu_custom_call.1} parent=1 // pred_check_branch
      %15 = sbr.rel (0) target = $region5
    $region4: #{tpu_custom_call.1} parent=1 // pred_region
      %s17 = ssub.s32 256, 256
      %18 = vsyncadd [#allocation3], %s17
      %s19 = sshll.u32 [#allocation2], 4
      %s20 = int_to_ptr.vmem [resolvable:$true] %s19
      %25 = dma.hbm_to_vmem [thread:$0]  %s0, 256, %s20, [#allocation3], 128, 128, 8
    $region5: #{tpu_custom_call.1} parent=1 // pred_fallthru
      _
    // Predicated region
    $region6: #{tpu_custom_call.1} parent=1 // pred_check
      _
    $region7: #{tpu_custom_call.1} parent=1 // pred_check_branch
      %27 = sbr.rel (0) target = $region9
    $region8: #{tpu_custom_call.1} parent=1 // pred_region
      %s29 = ssub.s32 256, 256
      %30 = vsyncadd [#allocation5], %s29
      %s31 = sshll.u32 [#allocation4], 4
      %s32 = int_to_ptr.vmem [resolvable:$true] %s31
      %37 = dma.hbm_to_vmem [thread:$0]  %s1, 256, %s32, [#allocation5], 128, 128, 8
    $region9: #{tpu_custom_call.1} parent=1 // pred_fallthru
      _
    // Predicated region
    $region10: #{tpu_custom_call.1} parent=1 // pred_check
      _
    $region11: #{tpu_custom_call.1} parent=1 // pred_check_branch
      %39 = sbr.rel (0) target = $region13
    $region12: #{tpu_custom_call.1} parent=1 // pred_region
      _
    $region13: #{tpu_custom_call.1} parent=1 // pred_fallthru
      _
    // Predicated region
    $region14: #{tpu_custom_call.1} parent=1 // pred_check
      _
    $region15: #{tpu_custom_call.1} parent=1 // pred_check_branch
      %41 = sbr.rel (0) target = $region17
    $region16: #{tpu_custom_call.1} parent=1 // pred_region
      _
    $region17: #{tpu_custom_call.1} parent=1 // pred_fallthru
      _
    // Predicated region
    $region18: #{tpu_custom_call.1} parent=1 // pred_check
      _
    $region19: #{tpu_custom_call.1} parent=1 // pred_check_branch
      %43 = sbr.rel (0) target = $region21
    $region20: #{tpu_custom_call.1} parent=1 // pred_region
      _
    $region21: #{tpu_custom_call.1} parent=1 // pred_fallthru
      _
    // Predicated region
    $region22: #{tpu_custom_call.1} parent=1 // pred_check
      _
    $region23: #{tpu_custom_call.1} parent=1 // pred_check_branch
      %45 = sbr.rel (0) target = $region25
    $region24: #{tpu_custom_call.1} parent=1 // pred_region
      _
    $region25: #{tpu_custom_call.1} parent=1 // pred_fallthru
      _
    // Predicated region
    $region26: #{tpu_custom_call.1} parent=1 // pred_check
      _
    $region27: #{tpu_custom_call.1} parent=1 // pred_check_branch
      %47 = sbr.rel (0) target = $region29
    $region28: #{tpu_custom_call.1} parent=1 // pred_region
      _
    $region29: #{tpu_custom_call.1} parent=1 // pred_fallthru
      _
    // Predicated region
    $region30: #{tpu_custom_call.1} parent=1 // pred_check
      _
    $region31: #{tpu_custom_call.1} parent=1 // pred_check_branch
      %49 = sbr.rel (0) target = $region33
    $region32: #{tpu_custom_call.1} parent=1 // pred_region
      %50 = dma.done [#allocation3], 256
    $region33: #{tpu_custom_call.1} parent=1 // pred_fallthru
      _
    // Predicated region
    $region34: #{tpu_custom_call.1} parent=1 // pred_check
      _
    $region35: #{tpu_custom_call.1} parent=1 // pred_check_branch
      %52 = sbr.rel (0) target = $region37
    $region36: #{tpu_custom_call.1} parent=1 // pred_region
      %53 = dma.done [#allocation5], 256
    $region37: #{tpu_custom_call.1} parent=1 // pred_fallthru
      _
    %v54 = vld [vmem:[#allocation2] sm:$0xff]
    %v55 = vld [vmem:[#allocation2 + $0x8] sm:$0xff]
    %v56 = vld [vmem:[#allocation4] sm:$0xff]
    %v57 = vld [vmem:[#allocation4 + $0x8] sm:$0xff]
    %v58 = vld [vmem:[%s2] sm:$0x1]
    %v60 = vlaneseq
    %v61 = vshrl.u32 %v60, 7
    %v62 = vsub.s32 0, %v61
    %v63 = vrot.slane %v58, %v62
    %vm65 = vcmask 130048
    %v67 = vsel %vm65, %v54, 0
    %v70 = vsel %vm65, %v55, 0
    %72 = vmatprep.subr.mxu0 0.0
    %73 = vmatpush1.msra.mxu0 0.0
    %74 = vmatprep.subr.mxu0 0.0
    %75 = vmatpush1.msra.mxu0 0.0
    %76 = vmatprep.subr.mxu0 0.0
    %77 = vmatpush1.msra.mxu0 0.0
    %78 = vmatprep.subr.mxu0 0.0
    %79 = vmatpush1.msra.mxu0 0.0
    %80 = vmatprep.subr.mxu0 0.0
    %81 = vmatpush1.msra.mxu0 0.0
    %82 = vmatprep.subr.mxu0 0.0
    %83 = vmatpush1.msra.mxu0 0.0
    %84 = vmatprep.subr.mxu0 0.0
    %85 = vmatpush1.msra.mxu0 0.0
    %86 = vmatprep.subr.mxu0 0.0
    %87 = vmatpush1.msra.mxu0 0.0
    %88 = vmatprep.subr.mxu0 0.0
    %89 = vmatpush1.msra.mxu0 0.0
    %90 = vmatprep.subr.mxu0 0.0
    %91 = vmatpush1.msra.mxu0 0.0
    %92 = vmatprep.subr.mxu0 0.0
    %93 = vmatpush1.msra.mxu0 0.0
    %94 = vmatprep.subr.mxu0 0.0
    %95 = vmatpush1.msra.mxu0 0.0
    %96 = vmatprep.subr.mxu0 0.0
    %97 = vmatpush1.msra.mxu0 0.0
    %98 = vmatprep.subr.mxu0 0.0
    %99 = vmatpush1.msra.mxu0 0.0
    %100 = vmatprep.subr.mxu0 0.0
    %101 = vmatpush1.msra.mxu0 %v57
    %102 = vmatprep.subr.mxu0 0.0
    %103 = vmatpush1.msra.mxu0 %v56
    %104 = vmatprep.subr.mxu0 0.0
    %105 = vmatpush2.msra.mxu0 0.0
    %106 = vmatprep.subr.mxu0 0.0
    %107 = vmatpush2.msra.mxu0 0.0
    %108 = vmatprep.subr.mxu0 0.0
    %109 = vmatpush2.msra.mxu0 0.0
    %110 = vmatprep.subr.mxu0 0.0
    %111 = vmatpush2.msra.mxu0 0.0
    %112 = vmatprep.subr.mxu0 0.0
    %113 = vmatpush2.msra.mxu0 0.0
    %114 = vmatprep.subr.mxu0 0.0
    %115 = vmatpush2.msra.mxu0 0.0
    %116 = vmatprep.subr.mxu0 0.0
    %117 = vmatpush2.msra.mxu0 0.0
    %118 = vmatprep.subr.mxu0 0.0
    %119 = vmatpush2.msra.mxu0 0.0
    %120 = vmatprep.subr.mxu0 0.0
    %121 = vmatpush2.msra.mxu0 0.0
    %122 = vmatprep.subr.mxu0 0.0
    %123 = vmatpush2.msra.mxu0 0.0
    %124 = vmatprep.subr.mxu0 0.0
    %125 = vmatpush2.msra.mxu0 0.0
    %126 = vmatprep.subr.mxu0 0.0
    %127 = vmatpush2.msra.mxu0 0.0
    %128 = vmatprep.subr.mxu0 0.0
    %129 = vmatpush2.msra.mxu0 0.0
    %130 = vmatprep.subr.mxu0 0.0
    %131 = vmatpush2.msra.mxu0 0.0
    %132 = vmatprep.subr.mxu0 0.0
    %133 = vmatpush2.msra.mxu0 0.0
    %134 = vmatprep.subr.mxu0 0.0
    %135 = vmatpush2.msra.mxu0 0.0
    %136 = vmatprep.mubr.f32.mxu0 0.0
    %137 = vmatmul.mubr.f32.gmra.mxu0 %v67
    %v138 = vpop.f32.mrf.mxu0
    %v139 = vadd.f32 %v63, %v138
    %v140 = vpop.f32.mrf.mxu0
    %141 = vmatprep.mubr.f32.mxu0 0.0
    %142 = vmatmul.mubr.f32.gmra.mxu0 %v70
    %v143 = vpop.f32.mrf.mxu0
    %v144 = vadd.f32 %v63, %v143
    %v145 = vpop.f32.mrf.mxu0
    %146 = vdwg.mxu0
    %v147 = vmax.f32 %v139, 0.0
    %v148 = vmax.f32 %v144, 0.0
    %v149 = vld [vmem:[%s3] sm:$0xff]
    %v150 = vld [vmem:[%s3 + $0x8] sm:$0xff]
    %v151 = vld [vmem:[%s3 + $0x10] sm:$0xff]
    %v152 = vld [vmem:[%s3 + $0x18] sm:$0xff]
    %v153 = vld [vmem:[%s3 + $0x20] sm:$0xff]
    %v154 = vld [vmem:[%s3 + $0x28] sm:$0xff]
    %v155 = vld [vmem:[%s3 + $0x30] sm:$0xff]
    %v156 = vld [vmem:[%s3 + $0x38] sm:$0xff]
    %v157 = vld [vmem:[%s4] sm:$0x1]
    %v159 = vlaneseq
    %v160 = vshrl.u32 %v159, 7
    %v161 = vsub.s32 0, %v160
    %v162 = vrot.slane %v157, %v161
    %vm164 = vcmask 523264
    %v166 = vsel %vm164, %v147, 0
    %v169 = vsel %vm164, %v148, 0
    %171 = vmatprep.subr.mxu0 0.0
    %172 = vmatpush1.msra.mxu0 0.0
    %173 = vmatprep.subr.mxu0 0.0
    %174 = vmatpush1.msra.mxu0 0.0
    %175 = vmatprep.subr.mxu0 0.0
    %176 = vmatpush1.msra.mxu0 0.0
    %177 = vmatprep.subr.mxu0 0.0
    %178 = vmatpush1.msra.mxu0 0.0
    %179 = vmatprep.subr.mxu0 0.0
    %180 = vmatpush1.msra.mxu0 0.0
    %181 = vmatprep.subr.mxu0 0.0
    %182 = vmatpush1.msra.mxu0 0.0
    %183 = vmatprep.subr.mxu0 0.0
    %184 = vmatpush1.msra.mxu0 0.0
    %185 = vmatprep.subr.mxu0 0.0
    %186 = vmatpush1.msra.mxu0 0.0
    %187 = vmatprep.subr.mxu0 0.0
    %188 = vmatpush1.msra.mxu0 %v156
    %189 = vmatprep.subr.mxu0 0.0
    %190 = vmatpush1.msra.mxu0 %v155
    %191 = vmatprep.subr.mxu0 0.0
    %192 = vmatpush1.msra.mxu0 %v154
    %193 = vmatprep.subr.mxu0 0.0
    %194 = vmatpush1.msra.mxu0 %v153
    %195 = vmatprep.subr.mxu0 0.0
    %196 = vmatpush1.msra.mxu0 %v152
    %197 = vmatprep.subr.mxu0 0.0
    %198 = vmatpush1.msra.mxu0 %v151
    %199 = vmatprep.subr.mxu0 0.0
    %200 = vmatpush1.msra.mxu0 %v150
    %201 = vmatprep.subr.mxu0 0.0
    %202 = vmatpush1.msra.mxu0 %v149
    %203 = vmatprep.subr.mxu0 0.0
    %204 = vmatpush2.msra.mxu0 0.0
    %205 = vmatprep.subr.mxu0 0.0
    %206 = vmatpush2.msra.mxu0 0.0
    %207 = vmatprep.subr.mxu0 0.0
    %208 = vmatpush2.msra.mxu0 0.0
    %209 = vmatprep.subr.mxu0 0.0
    %210 = vmatpush2.msra.mxu0 0.0
    %211 = vmatprep.subr.mxu0 0.0
    %212 = vmatpush2.msra.mxu0 0.0
    %213 = vmatprep.subr.mxu0 0.0
    %214 = vmatpush2.msra.mxu0 0.0
    %215 = vmatprep.subr.mxu0 0.0
    %216 = vmatpush2.msra.mxu0 0.0
    %217 = vmatprep.subr.mxu0 0.0
    %218 = vmatpush2.msra.mxu0 0.0
    %219 = vmatprep.subr.mxu0 0.0
    %220 = vmatpush2.msra.mxu0 0.0
    %221 = vmatprep.subr.mxu0 0.0
    %222 = vmatpush2.msra.mxu0 0.0
    %223 = vmatprep.subr.mxu0 0.0
    %224 = vmatpush2.msra.mxu0 0.0
    %225 = vmatprep.subr.mxu0 0.0
    %226 = vmatpush2.msra.mxu0 0.0
    %227 = vmatprep.subr.mxu0 0.0
    %228 = vmatpush2.msra.mxu0 0.0
    %229 = vmatprep.subr.mxu0 0.0
    %230 = vmatpush2.msra.mxu0 0.0
    %231 = vmatprep.subr.mxu0 0.0
    %232 = vmatpush2.msra.mxu0 0.0
    %233 = vmatprep.subr.mxu0 0.0
    %234 = vmatpush2.msra.mxu0 0.0
    %235 = vmatprep.mubr.f32.mxu0 0.0
    %236 = vmatmul.mubr.f32.gmra.mxu0 %v166
    %v237 = vpop.f32.mrf.mxu0
    %v238 = vadd.f32 %v162, %v237
    %v239 = vpop.f32.mrf.mxu0
    %240 = vmatprep.mubr.f32.mxu0 0.0
    %241 = vmatmul.mubr.f32.gmra.mxu0 %v169
    %v242 = vpop.f32.mrf.mxu0
    %v243 = vadd.f32 %v162, %v242
    %v244 = vpop.f32.mrf.mxu0
    %245 = vdwg.mxu0
    %v246 = vmax.f32 %v238, 0.0
    %v247 = vmax.f32 %v243, 0.0
    %v248 = vld [vmem:[%s5] sm:$0xff]
    %v249 = vld [vmem:[%s5 + $0x8] sm:$0xff]
    %v250 = vld [vmem:[%s5 + $0x10] sm:$0xff]
    %v251 = vld [vmem:[%s5 + $0x18] sm:$0xff]
    %v252 = vld [vmem:[%s5 + $0x20] sm:$0xff]
    %v253 = vld [vmem:[%s5 + $0x28] sm:$0xff]
    %v254 = vld [vmem:[%s5 + $0x30] sm:$0xff]
    %v255 = vld [vmem:[%s5 + $0x38] sm:$0xff]
    %v256 = vld [vmem:[%s6] sm:$0x1]
    %v258 = vlaneseq
    %v259 = vshrl.u32 %v258, 7
    %v260 = vsub.s32 0, %v259
    %v261 = vrot.slane %v256, %v260
    %v264 = vsel %vm164, %v246, 0
    %v267 = vsel %vm164, %v247, 0
    %269 = vmatprep.subr.mxu0 0.0
    %270 = vmatpush1.msra.mxu0 0.0
    %271 = vmatprep.subr.mxu0 0.0
    %272 = vmatpush1.msra.mxu0 0.0
    %273 = vmatprep.subr.mxu0 0.0
    %274 = vmatpush1.msra.mxu0 0.0
    %275 = vmatprep.subr.mxu0 0.0
    %276 = vmatpush1.msra.mxu0 0.0
    %277 = vmatprep.subr.mxu0 0.0
    %278 = vmatpush1.msra.mxu0 0.0
    %279 = vmatprep.subr.mxu0 0.0
    %280 = vmatpush1.msra.mxu0 0.0
    %281 = vmatprep.subr.mxu0 0.0
    %282 = vmatpush1.msra.mxu0 0.0
    %283 = vmatprep.subr.mxu0 0.0
    %284 = vmatpush1.msra.mxu0 0.0
    %285 = vmatprep.subr.mxu0 0.0
    %286 = vmatpush1.msra.mxu0 %v255
    %287 = vmatprep.subr.mxu0 0.0
    %288 = vmatpush1.msra.mxu0 %v254
    %289 = vmatprep.subr.mxu0 0.0
    %290 = vmatpush1.msra.mxu0 %v253
    %291 = vmatprep.subr.mxu0 0.0
    %292 = vmatpush1.msra.mxu0 %v252
    %293 = vmatprep.subr.mxu0 0.0
    %294 = vmatpush1.msra.mxu0 %v251
    %295 = vmatprep.subr.mxu0 0.0
    %296 = vmatpush1.msra.mxu0 %v250
    %297 = vmatprep.subr.mxu0 0.0
    %298 = vmatpush1.msra.mxu0 %v249
    %299 = vmatprep.subr.mxu0 0.0
    %300 = vmatpush1.msra.mxu0 %v248
    %301 = vmatprep.subr.mxu0 0.0
    %302 = vmatpush2.msra.mxu0 0.0
    %303 = vmatprep.subr.mxu0 0.0
    %304 = vmatpush2.msra.mxu0 0.0
    %305 = vmatprep.subr.mxu0 0.0
    %306 = vmatpush2.msra.mxu0 0.0
    %307 = vmatprep.subr.mxu0 0.0
    %308 = vmatpush2.msra.mxu0 0.0
    %309 = vmatprep.subr.mxu0 0.0
    %310 = vmatpush2.msra.mxu0 0.0
    %311 = vmatprep.subr.mxu0 0.0
    %312 = vmatpush2.msra.mxu0 0.0
    %313 = vmatprep.subr.mxu0 0.0
    %314 = vmatpush2.msra.mxu0 0.0
    %315 = vmatprep.subr.mxu0 0.0
    %316 = vmatpush2.msra.mxu0 0.0
    %317 = vmatprep.subr.mxu0 0.0
    %318 = vmatpush2.msra.mxu0 0.0
    %319 = vmatprep.subr.mxu0 0.0
    %320 = vmatpush2.msra.mxu0 0.0
    %321 = vmatprep.subr.mxu0 0.0
    %322 = vmatpush2.msra.mxu0 0.0
    %323 = vmatprep.subr.mxu0 0.0
    %324 = vmatpush2.msra.mxu0 0.0
    %325 = vmatprep.subr.mxu0 0.0
    %326 = vmatpush2.msra.mxu0 0.0
    %327 = vmatprep.subr.mxu0 0.0
    %328 = vmatpush2.msra.mxu0 0.0
    %329 = vmatprep.subr.mxu0 0.0
    %330 = vmatpush2.msra.mxu0 0.0
    %331 = vmatprep.subr.mxu0 0.0
    %332 = vmatpush2.msra.mxu0 0.0
    %333 = vmatprep.mubr.f32.mxu0 0.0
    %334 = vmatmul.mubr.f32.gmra.mxu0 %v264
    %v335 = vpop.f32.mrf.mxu0
    %v336 = vadd.f32 %v261, %v335
    %v337 = vpop.f32.mrf.mxu0
    %338 = vmatprep.mubr.f32.mxu0 0.0
    %339 = vmatmul.mubr.f32.gmra.mxu0 %v267
    %v340 = vpop.f32.mrf.mxu0
    %v341 = vadd.f32 %v261, %v340
    %v342 = vpop.f32.mrf.mxu0
    %343 = vdwg.mxu0
    %vm344 = vcmask 31744
    %345 = vst.msk [vmem:[%s7] sm:$0xff] %vm344, %v336
    %346 = vst.msk [vmem:[%s7 + $0x8] sm:$0xff] %vm344, %v341
    // Predicated region
    $region38: #{tpu_custom_call.1} parent=1 // pred_check
      _
    $region39: #{tpu_custom_call.1} parent=1 // pred_check_branch
      %348 = sbr.rel (0) target = $region41
    $region40: #{tpu_custom_call.1} parent=1 // pred_region
      _
    $region41: #{tpu_custom_call.1} parent=1 // pred_fallthru
      _
    // Predicated region
    $region42: #{tpu_custom_call.1} parent=1 // pred_check
      _
    $region43: #{tpu_custom_call.1} parent=1 // pred_check_branch
      %350 = sbr.rel (0) target = $region45
    $region44: #{tpu_custom_call.1} parent=1 // pred_region
      _
    $region45: #{tpu_custom_call.1} parent=1 // pred_fallthru
      _
    %351 = vsyncpa [#allocation3], 1
    %352 = vsyncpa [#allocation5], 1

</llo_original>
